<compile_context>
chip_gen: v7x
topology: tpu7x:2x2x1
jax: 0.10.0
libtpu: 0.0.40
codegen_flags: <defaults>
</compile_context>

<pallas_src>
import jax
import jax.numpy as jnp
from jax.experimental import pallas as pl
from jax.experimental.pallas import tpu as pltpu


def _deconv_bn_relu_kernel(x_ref, w_ref, scale_ref, shift_ref, o_ref):
    # x_ref:     (TM, Cin)       rows = flattened (n, d, h, w) sites
    # w_ref:     (Cin, 4*Cout)   columns packed as (dh, dw, cout)
    # scale_ref: (1, 4*Cout)     folded BN scale (gamma / sqrt(var+eps)), tiled 4x
    # shift_ref: (1, 4*Cout)     folded BN shift (beta + (bias-mean)*scale), tiled 4x
    y = jnp.dot(x_ref[...], w_ref[...], preferred_element_type=jnp.float32)
    y = y * scale_ref[...] + shift_ref[...]
    o_ref[...] = jnp.maximum(y, 0.0).astype(o_ref.dtype)


def sparse_convolution_upsample(
    x,            # (N, Cin, D, H, W)  dense-equivalent input
    weight,       # (Cin, Cout, 2, 2)  deconv weights (nplanes=1 depth dim squeezed)
    bias,         # (Cout,)
    bn_gamma,     # (Cout,)
    bn_beta,      # (Cout,)
    bn_mean,      # (Cout,)  running mean
    bn_var,       # (Cout,)  running var
    *,
    eps=1e-5,
    do_batch_norm=True,
    tile_m=512,   # rows per grid step; sweep larger (2k-8k) for big M / per-gen VMEM
):
    N, Cin, D, H, W = x.shape
    Cin_w, Cout, kh, kw = weight.shape
    assert Cin_w == Cin and kh == 2 and kw == 2

    # ---- wrapper-side layout plumbing (pure reshape/transpose, no padding) ----
    M = N * D * H * W
    xr = jnp.transpose(x, (0, 2, 3, 4, 1)).reshape(M, Cin)          # rows = (n,d,h,w)
    wmat = jnp.transpose(weight, (0, 2, 3, 1)).reshape(Cin, 4 * Cout)  # cols = (dh,dw,c)

    f32 = jnp.float32
    if do_batch_norm:
        scale_c = bn_gamma.astype(f32) / jnp.sqrt(bn_var.astype(f32) + eps)
        shift_c = bn_beta.astype(f32) + (bias.astype(f32) - bn_mean.astype(f32)) * scale_c
    else:
        scale_c = jnp.ones((Cout,), f32)
        shift_c = bias.astype(f32)
    scale = jnp.tile(scale_c, 4).reshape(1, 4 * Cout)
    shift = jnp.tile(shift_c, 4).reshape(1, 4 * Cout)

    tm = min(tile_m, M)
    grid = (pl.cdiv(M, tm),)

    itemsize = jnp.dtype(x.dtype).itemsize
    cost = pl.CostEstimate(
        flops=2 * M * Cin * 4 * Cout,
        transcendentals=0,
        bytes_accessed=M * Cin * itemsize
        + Cin * 4 * Cout * itemsize
        + M * 4 * Cout * itemsize,
    )

    out2 = pl.pallas_call(
        _deconv_bn_relu_kernel,
        out_shape=jax.ShapeDtypeStruct((M, 4 * Cout), x.dtype),
        grid_spec=pltpu.PrefetchScalarGridSpec(
            num_scalar_prefetch=0,
            grid=grid,
            in_specs=[
                pl.BlockSpec((tm, Cin), lambda i: (i, 0)),         # activations (streamed)
                pl.BlockSpec((Cin, 4 * Cout), lambda i: (0, 0)),   # weights (resident)
                pl.BlockSpec((1, 4 * Cout), lambda i: (0, 0)),     # folded scale
                pl.BlockSpec((1, 4 * Cout), lambda i: (0, 0)),     # folded shift
            ],
            out_specs=pl.BlockSpec((tm, 4 * Cout), lambda i: (i, 0)),
        ),
        compiler_params=pltpu.CompilerParams(
            dimension_semantics=("parallel",),
        ),
        cost_estimate=cost,
    )(xr, wmat, scale, shift)

    # Unpack (dh, dw) back into the upsampled spatial dims: out[n,c,d,2h+dh,2w+dw].
    y = out2.reshape(N, D, H, W, 2, 2, Cout)
    y = jnp.transpose(y, (0, 6, 1, 2, 4, 3, 5))   # (N, Cout, D, H, dh, W, dw)
    return y.reshape(N, Cout, D, 2 * H, 2 * W)


if __name__ == "__main__":
    key = jax.random.PRNGKey(0)
    k1, k2, k3, k4, k5, k6, k7 = jax.random.split(key, 7)

    # Small shapes consistent with an upsample block in the 3D U-ResNet:
    # batch=2, inplanes=8 -> outplanes=4, depth(nplanes axis)=4, spatial 16x16 -> 32x32.
    N, Cin, Cout, D, H, W = 2, 8, 4, 4, 16, 16
    x = jax.random.normal(k1, (N, Cin, D, H, W), dtype=jnp.float32)
    weight = jax.random.normal(k2, (Cin, Cout, 2, 2), dtype=jnp.float32) * 0.1
    bias = jax.random.normal(k3, (Cout,), dtype=jnp.float32) * 0.1
    gamma = 1.0 + 0.1 * jax.random.normal(k4, (Cout,), dtype=jnp.float32)
    beta = 0.1 * jax.random.normal(k5, (Cout,), dtype=jnp.float32)
    mean = 0.1 * jax.random.normal(k6, (Cout,), dtype=jnp.float32)
    var = jax.nn.softplus(jax.random.normal(k7, (Cout,), dtype=jnp.float32)) + 0.5

    out = sparse_convolution_upsample(x, weight, bias, gamma, beta, mean, var)
    out = jax.block_until_ready(out)

    # Pure-JAX reference: deconv(filter=2x2, stride=2x2) + bias + BN(inference) + ReLU.
    eps = 1e-5
    y = jnp.einsum("nidhw,icab->ncdhawb", x, weight).reshape(N, Cout, D, 2 * H, 2 * W)
    y = y + bias[None, :, None, None, None]
    scale_ref = gamma / jnp.sqrt(var + eps)
    y = (y - mean[None, :, None, None, None]) * scale_ref[None, :, None, None, None] \
        + beta[None, :, None, None, None]
    ref = jnp.maximum(y, 0.0)

    assert out.shape == ref.shape and out.dtype == ref.dtype
    assert jnp.allclose(out, ref, atol=1e-4, rtol=1e-4), float(jnp.max(jnp.abs(out - ref)))

    print("KERNEL_OK")
</pallas_src>

<mosaic_0001>
module attributes {stable_mosaic.version = 11 : i64} {
  func.func @_deconv_bn_relu_kernel(%arg0: i32, %arg1: memref<512x8xf32, #tpu.memory_space<vmem>>, %arg2: memref<8x16xf32, #tpu.memory_space<vmem>>, %arg3: memref<1x16xf32, #tpu.memory_space<vmem>>, %arg4: memref<1x16xf32, #tpu.memory_space<vmem>>, %arg5: memref<512x16xf32, #tpu.memory_space<vmem>>) attributes {dimension_semantics = [#tpu.dimension_semantics<parallel>], iteration_bounds = array<i64: 4>, scalar_prefetch = 0 : i64, scratch_operands = 0 : i64, tpu.core_type = #tpu.core_type<tc>, window_params = [{transform_indices = @transform_0, window_bounds = array<i64: 512, 8>}, {pipeline_mode = #tpu.pipeline_mode<synchronous>, transform_indices = @transform_1, window_bounds = array<i64: 8, 16>}, {pipeline_mode = #tpu.pipeline_mode<synchronous>, transform_indices = @transform_2, window_bounds = array<i64: 1, 16>}, {pipeline_mode = #tpu.pipeline_mode<synchronous>, transform_indices = @transform_3, window_bounds = array<i64: 1, 16>}, {transform_indices = @transform_4, window_bounds = array<i64: 512, 16>}]} {
    %c0 = arith.constant 0 : index
    %c0_0 = arith.constant 0 : index
    %0 = vector.load %arg1[%c0, %c0_0] : memref<512x8xf32, #tpu.memory_space<vmem>>, vector<512x8xf32>
    %c0_1 = arith.constant 0 : index
    %c0_2 = arith.constant 0 : index
    %1 = vector.load %arg2[%c0_1, %c0_2] : memref<8x16xf32, #tpu.memory_space<vmem>>, vector<8x16xf32>
    %cst = arith.constant dense<0.000000e+00> : vector<512x16xf32>
    %2 = tpu.matmul %0, %1, %cst {dimension_numbers = #tpu.dot_dimension_numbers<[1], [0], [0], [1], [0, 0, 1, 1], [], []>} : vector<512x8xf32>, vector<8x16xf32>, vector<512x16xf32> -> vector<512x16xf32>
    %c0_3 = arith.constant 0 : index
    %c0_4 = arith.constant 0 : index
    %3 = vector.load %arg3[%c0_3, %c0_4] : memref<1x16xf32, #tpu.memory_space<vmem>>, vector<1x16xf32>
    %4 = vector.broadcast %3 : vector<1x16xf32> to vector<512x16xf32>
    %5 = arith.mulf %2, %4 : vector<512x16xf32>
    %c0_5 = arith.constant 0 : index
    %c0_6 = arith.constant 0 : index
    %6 = vector.load %arg4[%c0_5, %c0_6] : memref<1x16xf32, #tpu.memory_space<vmem>>, vector<1x16xf32>
    %7 = vector.broadcast %6 : vector<1x16xf32> to vector<512x16xf32>
    %8 = arith.addf %5, %7 : vector<512x16xf32>
    %cst_7 = arith.constant 0.000000e+00 : f32
    %9 = vector.broadcast %cst_7 : f32 to vector<512x16xf32>
    %10 = arith.maximumf %8, %9 : vector<512x16xf32>
    %c0_8 = arith.constant 0 : index
    %c0_9 = arith.constant 0 : index
    %11 = vector.load %arg5[%c0_8, %c0_9] : memref<512x16xf32, #tpu.memory_space<vmem>>, vector<512x16xf32>
    tpu.vector_store %arg5[%c0_8, %c0_9], %10 {strides = array<i32>} : memref<512x16xf32, #tpu.memory_space<vmem>>, vector<512x16xf32>,
    return
  }
  func.func @transform_0(%arg0: i32) -> (i32, i32) {
    %c0_i32 = arith.constant 0 : i32
    %c0_i32_0 = arith.constant 0 : i32
    return %arg0, %c0_i32 : i32, i32
  }
  func.func @transform_1(%arg0: i32) -> (i32, i32) {
    %c0_i32 = arith.constant 0 : i32
    %c0_i32_0 = arith.constant 0 : i32
    %c0_i32_1 = arith.constant 0 : i32
    return %c0_i32, %c0_i32_0 : i32, i32
  }
  func.func @transform_2(%arg0: i32) -> (i32, i32) {
    %c0_i32 = arith.constant 0 : i32
    %c0_i32_0 = arith.constant 0 : i32
    %c0_i32_1 = arith.constant 0 : i32
    return %c0_i32, %c0_i32_0 : i32, i32
  }
  func.func @transform_3(%arg0: i32) -> (i32, i32) {
    %c0_i32 = arith.constant 0 : i32
    %c0_i32_0 = arith.constant 0 : i32
    %c0_i32_1 = arith.constant 0 : i32
    return %c0_i32, %c0_i32_0 : i32, i32
  }
  func.func @transform_4(%arg0: i32) -> (i32, i32) {
    %c0_i32 = arith.constant 0 : i32
    %c0_i32_0 = arith.constant 0 : i32
    return %arg0, %c0_i32 : i32, i32
  }
}

</mosaic_0001>

<llo_original>
// kernel: tpu_custom_call.1
$region0: #{tpu_custom_call.1}
  #allocation0 [shape = 'u32[]', space=smem, size = 0x4, offset = 0x4, fixed_abs, tag = 'smem constant byte address 0x4 - core index']
  #allocation1 [shape = 'u32[144,128]{1,0:T(1,128)}', space=vmem, size = 0x12000, scoped, tag = 'internal scratch']
  %s0 = inlined_call_operand.vmem [shape: f32[2048,8], index: 0, kind: input, shape index: {}]
  %s1 = inlined_call_operand.vmem [shape: f32[8,16], index: 1, kind: input, shape index: {}]
  %s2 = inlined_call_operand.vmem [shape: f32[1,16], index: 2, kind: input, shape index: {}]
  %s3 = inlined_call_operand.vmem [shape: f32[1,16], index: 3, kind: input, shape index: {}]
  %s4 = inlined_call_operand.vmem [shape: f32[2048,16], index: 4, kind: output, shape index: {}]
  %s5 = sld [smem:[#allocation0]]
  $region49: #{tpu_custom_call.1} parent=0
    _
  %s7 = ssub.s32 1, %s5
  %s8 = scalar_select 0, %s7, %s5
  loop: start=0, step=1, limit=6
  $region2: #{tpu_custom_call.1} parent=0 // loop_pre_header
    _
  $region3: #{tpu_custom_call.1} parent=0 // loop_header
    %s10 = sphi 0, %s14
    %p11 = scmp.ge.s32.totalorder %s10, 6
    %s20 = sphi 0, %s22
    %s23 = sphi 0, %s20
    %s24 = sphi 0, %s23
    %s40 = sphi 0, %s24
    %s44 = sphi 0, %s44
    %s46 = sphi 0, %s44
    %s47 = sphi 0, %s46
    %s61 = sphi 0, %s47
    %s65 = sphi 0, %s65
    %s67 = sphi 0, %s65
    %s68 = sphi 0, %s67
    %s82 = sphi 0, %s68
    %s86 = sphi 0, %s86
    %s88 = sphi 0, %s86
    %s89 = sphi 0, %s88
    %s103 = sphi 0, %s89
    %s109 = sphi 0, %s111
    %s112 = sphi 0, %s109
    %s113 = sphi 0, %s112
    %s129 = sphi 0, %s113
  $region4: #{tpu_custom_call.1} parent=0 // loop_header_branch
    %13 = sbr.rel (%p11) target = $region8
  $region5: #{tpu_custom_call.1} parent=0 // loop_body
    %s15 = ssub.s32 %s10, 1
    %s16 = ssub.s32 %s10, 2
    %s17 = sadd.s32 %s10, 1
    %s18 = ssub.s32 %s10, %s17
    %p19 = scmp.eq.s32.totalorder %s18, 0
    %s21 = sadd.s32 %s20, 1
    %s22 = scalar_select %p19, %s20, %s21
    %p25 = pneg %p19
    %p26 = scmp.eq.s32.totalorder %s10, 3
    %p27 = por %p25, %p26
    %p28 = scmp.ne.s32.totalorder %s20, %s23
    %p29 = scmp.eq.s32.totalorder %s10, 0
    %p30 = por %p28, %p29
    %p31 = scmp.ne.s32.totalorder %s20, %s23
    %p32 = scmp.eq.s32.totalorder %s15, 3
    %p33 = por %p31, %p32
    %p34 = scmp.ne.s32.totalorder %s23, %s24
    %p35 = scmp.eq.s32.totalorder %s15, 0
    %p36 = por %p34, %p35
    %p37 = scmp.ne.s32.totalorder %s23, %s24
    %p38 = scmp.eq.s32.totalorder %s16, 3
    %p39 = por %p37, %p38
    %p41 = scmp.ne.s32.totalorder %s24, %s40
    %p42 = scmp.eq.s32.totalorder %s16, 0
    %p43 = por %p41, %p42
    %s45 = sadd.s32 %s44, 1
    %p48 = scmp.eq.s32.totalorder %s10, 3
    %p49 = scmp.ne.s32.totalorder %s44, %s46
    %p50 = scmp.eq.s32.totalorder %s10, 0
    %p51 = por %p49, %p50
    %p52 = scmp.ne.s32.totalorder %s44, %s46
    %p53 = scmp.eq.s32.totalorder %s15, 3
    %p54 = por %p52, %p53
    %p55 = scmp.ne.s32.totalorder %s46, %s47
    %p56 = scmp.eq.s32.totalorder %s15, 0
    %p57 = por %p55, %p56
    %p58 = scmp.ne.s32.totalorder %s46, %s47
    %p59 = scmp.eq.s32.totalorder %s16, 3
    %p60 = por %p58, %p59
    %p62 = scmp.ne.s32.totalorder %s47, %s61
    %p63 = scmp.eq.s32.totalorder %s16, 0
    %p64 = por %p62, %p63
    %s66 = sadd.s32 %s65, 1
    %p69 = scmp.eq.s32.totalorder %s10, 3
    %p70 = scmp.ne.s32.totalorder %s65, %s67
    %p71 = scmp.eq.s32.totalorder %s10, 0
    %p72 = por %p70, %p71
    %p73 = scmp.ne.s32.totalorder %s65, %s67
    %p74 = scmp.eq.s32.totalorder %s15, 3
    %p75 = por %p73, %p74
    %p76 = scmp.ne.s32.totalorder %s67, %s68
    %p77 = scmp.eq.s32.totalorder %s15, 0
    %p78 = por %p76, %p77
    %p79 = scmp.ne.s32.totalorder %s67, %s68
    %p80 = scmp.eq.s32.totalorder %s16, 3
    %p81 = por %p79, %p80
    %p83 = scmp.ne.s32.totalorder %s68, %s82
    %p84 = scmp.eq.s32.totalorder %s16, 0
    %p85 = por %p83, %p84
    %s87 = sadd.s32 %s86, 1
    %p90 = scmp.eq.s32.totalorder %s10, 3
    %p91 = scmp.ne.s32.totalorder %s86, %s88
    %p92 = scmp.eq.s32.totalorder %s10, 0
    %p93 = por %p91, %p92
    %p94 = scmp.ne.s32.totalorder %s86, %s88
    %p95 = scmp.eq.s32.totalorder %s15, 3
    %p96 = por %p94, %p95
    %p97 = scmp.ne.s32.totalorder %s88, %s89
    %p98 = scmp.eq.s32.totalorder %s15, 0
    %p99 = por %p97, %p98
    %p100 = scmp.ne.s32.totalorder %s88, %s89
    %p101 = scmp.eq.s32.totalorder %s16, 3
    %p102 = por %p100, %p101
    %p104 = scmp.ne.s32.totalorder %s89, %s103
    %p105 = scmp.eq.s32.totalorder %s16, 0
    %p106 = por %p104, %p105
    %s107 = ssub.s32 %s10, %s17
    %p108 = scmp.eq.s32.totalorder %s107, 0
    %s110 = sadd.s32 %s109, 1
    %s111 = scalar_select %p108, %s109, %s110
    %p114 = pneg %p108
    %p115 = scmp.eq.s32.totalorder %s10, 3
    %p116 = por %p114, %p115
    %p117 = scmp.ne.s32.totalorder %s109, %s112
    %p118 = scmp.eq.s32.totalorder %s10, 0
    %p119 = por %p117, %p118
    %p120 = scmp.ne.s32.totalorder %s109, %s112
    %p121 = scmp.eq.s32.totalorder %s15, 3
    %p122 = por %p120, %p121
    %p123 = scmp.ne.s32.totalorder %s112, %s113
    %p124 = scmp.eq.s32.totalorder %s15, 0
    %p125 = por %p123, %p124
    %p126 = scmp.ne.s32.totalorder %s112, %s113
    %p127 = scmp.eq.s32.totalorder %s16, 3
    %p128 = por %p126, %p127
    %p130 = scmp.ne.s32.totalorder %s113, %s129
    %p131 = scmp.eq.s32.totalorder %s16, 0
    %p132 = por %p130, %p131
    %p133 = scmp.le.s32.totalorder 1, %s10
    %p134 = scmp.lt.s32.totalorder %s10, 5
    %p135 = pnand %p133, %p134
    %p136 = pneg %p135
    // Predicated region
    $region9: #{tpu_custom_call.1} parent=5 // pred_check
      _
    $region10: #{tpu_custom_call.1} parent=5 // pred_check_branch
      %138 = sbr.rel (%p135) target = $region12
    $region11: #{tpu_custom_call.1} parent=5 // pred_region
      %s139 = ssub.s32 %s10, 1
      // Predicated region
      $region13: #{tpu_custom_call.1} parent=11 // pred_check
        %p140 = pneg %p57
      $region14: #{tpu_custom_call.1} parent=11 // pred_check_branch
        %142 = sbr.rel (%p140) target = $region16
      $region15: #{tpu_custom_call.1} parent=11 // pred_region
        _
      $region16: #{tpu_custom_call.1} parent=11 // pred_fallthru
        _
      // Predicated region
      $region17: #{tpu_custom_call.1} parent=11 // pred_check
        %p143 = pneg %p78
      $region18: #{tpu_custom_call.1} parent=11 // pred_check_branch
        %145 = sbr.rel (%p143) target = $region20
      $region19: #{tpu_custom_call.1} parent=11 // pred_region
        _
      $region20: #{tpu_custom_call.1} parent=11 // pred_fallthru
        _
      // Predicated region
      $region21: #{tpu_custom_call.1} parent=11 // pred_check
        %p146 = pneg %p99
      $region22: #{tpu_custom_call.1} parent=11 // pred_check_branch
        %148 = sbr.rel (%p146) target = $region24
      $region23: #{tpu_custom_call.1} parent=11 // pred_region
        _
      $region24: #{tpu_custom_call.1} parent=11 // pred_fallthru
        _
    $region12: #{tpu_custom_call.1} parent=5 // pred_fallthru
      _
    %p149 = scmp.lt.s32.totalorder %s10, 4
    // Predicated region
    $region25: #{tpu_custom_call.1} parent=5 // pred_check
      %p150 = pneg %p149
    $region26: #{tpu_custom_call.1} parent=5 // pred_check_branch
      %152 = sbr.rel (%p150) target = $region28
    $region27: #{tpu_custom_call.1} parent=5 // pred_region
      // Predicated region
      $region29: #{tpu_custom_call.1} parent=27 // pred_check
        %p153 = pneg %p30
      $region30: #{tpu_custom_call.1} parent=27 // pred_check_branch
        %155 = sbr.rel (%p153) target = $region32
      $region31: #{tpu_custom_call.1} parent=27 // pred_region
        %s156 = smul.u32 64, %s10
        %p157 = scmp.lt.s32.totalorder %s156, 255
        %s158 = scalar_select %p157, %s156, 255
        %s159 = smul.addr %s158, 8
        %s160 = scalar_lea.vmem %s0, %s159
        %s161 = smul.u32 64, %s10
      $region32: #{tpu_custom_call.1} parent=27 // pred_fallthru
        _
    $region28: #{tpu_custom_call.1} parent=5 // pred_fallthru
      _
    %p162 = scmp.le.s32.totalorder 1, %s10
    %p163 = scmp.lt.s32.totalorder %s10, 5
    %p164 = pnand %p162, %p163
    %p165 = pneg %p164
    // Predicated region
    $region33: #{tpu_custom_call.1} parent=5 // pred_check
      _
    $region34: #{tpu_custom_call.1} parent=5 // pred_check_branch
      %167 = sbr.rel (%p164) target = $region36
    $region35: #{tpu_custom_call.1} parent=5 // pred_region
      %s168 = ssub.s32 %s10, 1
      %s169 = smul.u32 64, %s15
      %p170 = scmp.lt.s32.totalorder %s169, 255
      %s171 = scalar_select %p170, %s169, 255
      %s172 = smul.addr %s171, 8
      %s173 = scalar_lea.vmem %s0, %s172
      %p174 = pneg %p36
      %p175 = pneg %p33
      %p176 = pneg %p57
      %p177 = pneg %p54
      %p178 = pneg %p78
      %p179 = pneg %p75
      %p180 = pneg %p99
      %p181 = pneg %p96
      %p182 = pneg %p125
      %p183 = pneg %p122
      %s184 = smul.u32 64, %s15
      %p185 = scmp.lt.s32.totalorder %s184, 255
      %s186 = scalar_select %p185, %s184, 255
      %s187 = smul.addr %s186, 8
      %s188 = scalar_lea.vmem %s4, %s187
      %s189 = smul.u32 64, %s15
      %p190 = scmp.lt.s32.totalorder %s189, 255
      %s191 = scalar_select %p190, %s189, 255
      %s192 = smul.addr %s191, 8
      %s193 = scalar_lea.vmem %s0, %s192
      %s194 = smul.u32 64, %s15
      %s195 = smul.u32 64, %s15
      %p196 = scmp.lt.s32.totalorder %s195, 255
      %s197 = scalar_select %p196, %s195, 255
      %s198 = smul.addr %s197, 8
      %s199 = scalar_lea.vmem %s4, %s198
      %s200 = smul.u32 64, %s15
      %v201 = vld [vmem:[%s193] sm:$0xff]
      %v202 = vld [vmem:[%s193 + $0x8] sm:$0xff]
      %v203 = vld [vmem:[%s193 + $0x10] sm:$0xff]
      %v204 = vld [vmem:[%s193 + $0x18] sm:$0xff]
      %v205 = vld [vmem:[%s193 + $0x20] sm:$0xff]
      %v206 = vld [vmem:[%s193 + $0x28] sm:$0xff]
      %v207 = vld [vmem:[%s193 + $0x30] sm:$0xff]
      %v208 = vld [vmem:[%s193 + $0x38] sm:$0xff]
      %v209 = vld [vmem:[%s193 + $0x40] sm:$0xff]
      %v210 = vld [vmem:[%s193 + $0x48] sm:$0xff]
      %v211 = vld [vmem:[%s193 + $0x50] sm:$0xff]
      %v212 = vld [vmem:[%s193 + $0x58] sm:$0xff]
      %v213 = vld [vmem:[%s193 + $0x60] sm:$0xff]
      %v214 = vld [vmem:[%s193 + $0x68] sm:$0xff]
      %v215 = vld [vmem:[%s193 + $0x70] sm:$0xff]
      %v216 = vld [vmem:[%s193 + $0x78] sm:$0xff]
      %v217 = vld [vmem:[%s193 + $0x80] sm:$0xff]
      %v218 = vld [vmem:[%s193 + $0x88] sm:$0xff]
      %v219 = vld [vmem:[%s193 + $0x90] sm:$0xff]
      %v220 = vld [vmem:[%s193 + $0x98] sm:$0xff]
      %v221 = vld [vmem:[%s193 + $0xa0] sm:$0xff]
      %v222 = vld [vmem:[%s193 + $0xa8] sm:$0xff]
      %v223 = vld [vmem:[%s193 + $0xb0] sm:$0xff]
      %v224 = vld [vmem:[%s193 + $0xb8] sm:$0xff]
      %v225 = vld [vmem:[%s193 + $0xc0] sm:$0xff]
      %v226 = vld [vmem:[%s193 + $0xc8] sm:$0xff]
      %v227 = vld [vmem:[%s193 + $0xd0] sm:$0xff]
      %v228 = vld [vmem:[%s193 + $0xd8] sm:$0xff]
      %v229 = vld [vmem:[%s193 + $0xe0] sm:$0xff]
      %v230 = vld [vmem:[%s193 + $0xe8] sm:$0xff]
      %v231 = vld [vmem:[%s193 + $0xf0] sm:$0xff]
      %v232 = vld [vmem:[%s193 + $0xf8] sm:$0xff]
      %v233 = vld [vmem:[%s193 + $0x100] sm:$0xff]
      %v234 = vld [vmem:[%s193 + $0x108] sm:$0xff]
      %v235 = vld [vmem:[%s193 + $0x110] sm:$0xff]
      %v236 = vld [vmem:[%s193 + $0x118] sm:$0xff]
      %v237 = vld [vmem:[%s193 + $0x120] sm:$0xff]
      %v238 = vld [vmem:[%s193 + $0x128] sm:$0xff]
      %v239 = vld [vmem:[%s193 + $0x130] sm:$0xff]
      %v240 = vld [vmem:[%s193 + $0x138] sm:$0xff]
      %v241 = vld [vmem:[%s193 + $0x140] sm:$0xff]
      %v242 = vld [vmem:[%s193 + $0x148] sm:$0xff]
      %v243 = vld [vmem:[%s193 + $0x150] sm:$0xff]
      %v244 = vld [vmem:[%s193 + $0x158] sm:$0xff]
      %v245 = vld [vmem:[%s193 + $0x160] sm:$0xff]
      %v246 = vld [vmem:[%s193 + $0x168] sm:$0xff]
      %v247 = vld [vmem:[%s193 + $0x170] sm:$0xff]
      %v248 = vld [vmem:[%s193 + $0x178] sm:$0xff]
      %v249 = vld [vmem:[%s193 + $0x180] sm:$0xff]
      %v250 = vld [vmem:[%s193 + $0x188] sm:$0xff]
      %v251 = vld [vmem:[%s193 + $0x190] sm:$0xff]
      %v252 = vld [vmem:[%s193 + $0x198] sm:$0xff]
      %v253 = vld [vmem:[%s193 + $0x1a0] sm:$0xff]
      %v254 = vld [vmem:[%s193 + $0x1a8] sm:$0xff]
      %v255 = vld [vmem:[%s193 + $0x1b0] sm:$0xff]
      %v256 = vld [vmem:[%s193 + $0x1b8] sm:$0xff]
      %v257 = vld [vmem:[%s193 + $0x1c0] sm:$0xff]
      %v258 = vld [vmem:[%s193 + $0x1c8] sm:$0xff]
      %v259 = vld [vmem:[%s193 + $0x1d0] sm:$0xff]
      %v260 = vld [vmem:[%s193 + $0x1d8] sm:$0xff]
      %v261 = vld [vmem:[%s193 + $0x1e0] sm:$0xff]
      %v262 = vld [vmem:[%s193 + $0x1e8] sm:$0xff]
      %v263 = vld [vmem:[%s193 + $0x1f0] sm:$0xff]
      %v264 = vld [vmem:[%s193 + $0x1f8] sm:$0xff]
      %v265 = vld [vmem:[%s1] sm:$0xff]
      %vm266 = vcmask 64512
      %v268 = vsel %vm266, %v201, 0
      %v271 = vsel %vm266, %v202, 0
      %v274 = vsel %vm266, %v203, 0
      %v277 = vsel %vm266, %v204, 0
      %v280 = vsel %vm266, %v205, 0
      %v283 = vsel %vm266, %v206, 0
      %v286 = vsel %vm266, %v207, 0
      %v289 = vsel %vm266, %v208, 0
      %v292 = vsel %vm266, %v209, 0
      %v295 = vsel %vm266, %v210, 0
      %v298 = vsel %vm266, %v211, 0
      %v301 = vsel %vm266, %v212, 0
      %v304 = vsel %vm266, %v213, 0
      %v307 = vsel %vm266, %v214, 0
      %v310 = vsel %vm266, %v215, 0
      %v313 = vsel %vm266, %v216, 0
      %v316 = vsel %vm266, %v217, 0
      %v319 = vsel %vm266, %v218, 0
      %v322 = vsel %vm266, %v219, 0
      %v325 = vsel %vm266, %v220, 0
      %v328 = vsel %vm266, %v221, 0
      %v331 = vsel %vm266, %v222, 0
      %v334 = vsel %vm266, %v223, 0
      %v337 = vsel %vm266, %v224, 0
      %v340 = vsel %vm266, %v225, 0
      %v343 = vsel %vm266, %v226, 0
      %v346 = vsel %vm266, %v227, 0
      %v349 = vsel %vm266, %v228, 0
      %v352 = vsel %vm266, %v229, 0
      %v355 = vsel %vm266, %v230, 0
      %v358 = vsel %vm266, %v231, 0
      %v361 = vsel %vm266, %v232, 0
      %v364 = vsel %vm266, %v233, 0
      %v367 = vsel %vm266, %v234, 0
      %v370 = vsel %vm266, %v235, 0
      %v373 = vsel %vm266, %v236, 0
      %v376 = vsel %vm266, %v237, 0
      %v379 = vsel %vm266, %v238, 0
      %v382 = vsel %vm266, %v239, 0
      %v385 = vsel %vm266, %v240, 0
      %v388 = vsel %vm266, %v241, 0
      %v391 = vsel %vm266, %v242, 0
      %v394 = vsel %vm266, %v243, 0
      %v397 = vsel %vm266, %v244, 0
      %v400 = vsel %vm266, %v245, 0
      %v403 = vsel %vm266, %v246, 0
      %v406 = vsel %vm266, %v247, 0
      %v409 = vsel %vm266, %v248, 0
      %v412 = vsel %vm266, %v249, 0
      %v415 = vsel %vm266, %v250, 0
      %v418 = vsel %vm266, %v251, 0
      %v421 = vsel %vm266, %v252, 0
      %v424 = vsel %vm266, %v253, 0
      %v427 = vsel %vm266, %v254, 0
      %v430 = vsel %vm266, %v255, 0
      %v433 = vsel %vm266, %v256, 0
      %v436 = vsel %vm266, %v257, 0
      %v439 = vsel %vm266, %v258, 0
      %v442 = vsel %vm266, %v259, 0
      %v445 = vsel %vm266, %v260, 0
      %v448 = vsel %vm266, %v261, 0
      %v451 = vsel %vm266, %v262, 0
      %v454 = vsel %vm266, %v263, 0
      %v457 = vsel %vm266, %v264, 0
      %459 = vmatprep.subr.mxu0 0.0
      %460 = vmatpush1.msra.mxu0 %v265
      %461 = vmatprep.subr.mxu0 0.0
      %462 = vmatpush1.msra.mxu0 0.0
      %463 = vmatprep.subr.mxu0 0.0
      %464 = vmatpush1.msra.mxu0 0.0
      %465 = vmatprep.subr.mxu0 0.0
      %466 = vmatpush1.msra.mxu0 0.0
      %467 = vmatprep.subr.mxu0 0.0
      %468 = vmatpush1.msra.mxu0 0.0
      %469 = vmatprep.subr.mxu0 0.0
      %470 = vmatpush1.msra.mxu0 0.0
      %471 = vmatprep.subr.mxu0 0.0
      %472 = vmatpush1.msra.mxu0 0.0
      %473 = vmatprep.subr.mxu0 0.0
      %474 = vmatpush1.msra.mxu0 0.0
      %475 = vmatprep.subr.mxu0 0.0
      %476 = vmatpush1.msra.mxu0 0.0
      %477 = vmatprep.subr.mxu0 0.0
      %478 = vmatpush1.msra.mxu0 0.0
      %479 = vmatprep.subr.mxu0 0.0
      %480 = vmatpush1.msra.mxu0 0.0
      %481 = vmatprep.subr.mxu0 0.0
      %482 = vmatpush1.msra.mxu0 0.0
      %483 = vmatprep.subr.mxu0 0.0
      %484 = vmatpush1.msra.mxu0 0.0
      %485 = vmatprep.subr.mxu0 0.0
      %486 = vmatpush1.msra.mxu0 0.0
      %487 = vmatprep.subr.mxu0 0.0
      %488 = vmatpush1.msra.mxu0 0.0
      %489 = vmatprep.subr.mxu0 0.0
      %490 = vmatpush1.msra.mxu0 0.0
      %491 = vmatprep.subr.mxu0 0.0
      %492 = vmatpush1.msra.mxu0 0.0
      %493 = vmatprep.subr.mxu0 0.0
      %494 = vmatpush1.msra.mxu0 0.0
      %495 = vmatprep.subr.mxu0 0.0
      %496 = vmatpush1.msra.mxu0 0.0
      %497 = vmatprep.subr.mxu0 0.0
      %498 = vmatpush1.msra.mxu0 0.0
      %499 = vmatprep.subr.mxu0 0.0
      %500 = vmatpush1.msra.mxu0 0.0
      %501 = vmatprep.subr.mxu0 0.0
      %502 = vmatpush1.msra.mxu0 0.0
      %503 = vmatprep.subr.mxu0 0.0
      %504 = vmatpush1.msra.mxu0 0.0
      %505 = vmatprep.subr.mxu0 0.0
      %506 = vmatpush1.msra.mxu0 0.0
      %507 = vmatprep.subr.mxu0 0.0
      %508 = vmatpush1.msra.mxu0 0.0
      %509 = vmatprep.subr.mxu0 0.0
      %510 = vmatpush1.msra.mxu0 0.0
      %511 = vmatprep.subr.mxu0 0.0
      %512 = vmatpush1.msra.mxu0 0.0
      %513 = vmatprep.subr.mxu0 0.0
      %514 = vmatpush1.msra.mxu0 0.0
      %515 = vmatprep.subr.mxu0 0.0
      %516 = vmatpush1.msra.mxu0 0.0
      %517 = vmatprep.subr.mxu0 0.0
      %518 = vmatpush1.msra.mxu0 0.0
      %519 = vmatprep.subr.mxu0 0.0
      %520 = vmatpush1.msra.mxu0 0.0
      %521 = vmatprep.subr.mxu0 0.0
      %522 = vmatpush1.msra.mxu0 0.0
      %523 = vmatprep.mubr.f32.mxu0 0.0
      %524 = vmatmul.mubr.f32.gmra.mrb[0].mxu0 %v268
      %v525 = vpop.f32.mrb[0].mxu0
      %v526 = vadd.f32 0.0, %v525
      %v527 = vpop.f32.mrb[0].mxu0
      %528 = vmatprep.mubr.f32.mxu0 0.0
      %529 = vmatmul.mubr.f32.gmra.mrb[0].mxu0 %v271
      %v530 = vpop.f32.mrb[0].mxu0
      %v531 = vadd.f32 0.0, %v530
      %v532 = vpop.f32.mrb[0].mxu0
      %533 = vmatprep.mubr.f32.mxu0 0.0
      %534 = vmatmul.mubr.f32.gmra.mrb[0].mxu0 %v274
      %v535 = vpop.f32.mrb[0].mxu0
      %v536 = vadd.f32 0.0, %v535
      %v537 = vpop.f32.mrb[0].mxu0
      %538 = vmatprep.mubr.f32.mxu0 0.0
      %539 = vmatmul.mubr.f32.gmra.mrb[0].mxu0 %v277
      %v540 = vpop.f32.mrb[0].mxu0
      %v541 = vadd.f32 0.0, %v540
      %v542 = vpop.f32.mrb[0].mxu0
      %543 = vmatprep.mubr.f32.mxu0 0.0
      %544 = vmatmul.mubr.f32.gmra.mrb[0].mxu0 %v280
      %v545 = vpop.f32.mrb[0].mxu0
      %v546 = vadd.f32 0.0, %v545
      %v547 = vpop.f32.mrb[0].mxu0
      %548 = vmatprep.mubr.f32.mxu0 0.0
      %549 = vmatmul.mubr.f32.gmra.mrb[0].mxu0 %v283
      %v550 = vpop.f32.mrb[0].mxu0
      %v551 = vadd.f32 0.0, %v550
      %v552 = vpop.f32.mrb[0].mxu0
      %553 = vmatprep.mubr.f32.mxu0 0.0
      %554 = vmatmul.mubr.f32.gmra.mrb[0].mxu0 %v286
      %v555 = vpop.f32.mrb[0].mxu0
      %v556 = vadd.f32 0.0, %v555
      %v557 = vpop.f32.mrb[0].mxu0
      %558 = vmatprep.mubr.f32.mxu0 0.0
      %559 = vmatmul.mubr.f32.gmra.mrb[0].mxu0 %v289
      %v560 = vpop.f32.mrb[0].mxu0
      %v561 = vadd.f32 0.0, %v560
      %v562 = vpop.f32.mrb[0].mxu0
      %563 = vmatprep.mubr.f32.mxu0 0.0
      %564 = vmatmul.mubr.f32.gmra.mrb[0].mxu0 %v292
      %v565 = vpop.f32.mrb[0].mxu0
      %v566 = vadd.f32 0.0, %v565
      %v567 = vpop.f32.mrb[0].mxu0
      %568 = vmatprep.mubr.f32.mxu0 0.0
      %569 = vmatmul.mubr.f32.gmra.mrb[0].mxu0 %v295
      %v570 = vpop.f32.mrb[0].mxu0
      %v571 = vadd.f32 0.0, %v570
      %v572 = vpop.f32.mrb[0].mxu0
      %573 = vmatprep.mubr.f32.mxu0 0.0
      %574 = vmatmul.mubr.f32.gmra.mrb[0].mxu0 %v298
      %v575 = vpop.f32.mrb[0].mxu0
      %v576 = vadd.f32 0.0, %v575
      %v577 = vpop.f32.mrb[0].mxu0
      %578 = vmatprep.mubr.f32.mxu0 0.0
      %579 = vmatmul.mubr.f32.gmra.mrb[0].mxu0 %v301
      %v580 = vpop.f32.mrb[0].mxu0
      %v581 = vadd.f32 0.0, %v580
      %v582 = vpop.f32.mrb[0].mxu0
      %583 = vmatprep.mubr.f32.mxu0 0.0
      %584 = vmatmul.mubr.f32.gmra.mrb[0].mxu0 %v304
      %v585 = vpop.f32.mrb[0].mxu0
      %v586 = vadd.f32 0.0, %v585
      %v587 = vpop.f32.mrb[0].mxu0
      %588 = vmatprep.mubr.f32.mxu0 0.0
      %589 = vmatmul.mubr.f32.gmra.mrb[0].mxu0 %v307
      %v590 = vpop.f32.mrb[0].mxu0
      %v591 = vadd.f32 0.0, %v590
      %v592 = vpop.f32.mrb[0].mxu0
      %593 = vmatprep.mubr.f32.mxu0 0.0
      %594 = vmatmul.mubr.f32.gmra.mrb[0].mxu0 %v310
      %v595 = vpop.f32.mrb[0].mxu0
      %v596 = vadd.f32 0.0, %v595
      %v597 = vpop.f32.mrb[0].mxu0
      %598 = vmatprep.mubr.f32.mxu0 0.0
      %599 = vmatmul.mubr.f32.gmra.mrb[0].mxu0 %v313
      %v600 = vpop.f32.mrb[0].mxu0
      %v601 = vadd.f32 0.0, %v600
      %v602 = vpop.f32.mrb[0].mxu0
      %603 = vmatprep.mubr.f32.mxu0 0.0
      %604 = vmatmul.mubr.f32.gmra.mrb[0].mxu0 %v316
      %v605 = vpop.f32.mrb[0].mxu0
      %v606 = vadd.f32 0.0, %v605
      %v607 = vpop.f32.mrb[0].mxu0
      %608 = vmatprep.mubr.f32.mxu0 0.0
      %609 = vmatmul.mubr.f32.gmra.mrb[0].mxu0 %v319
      %v610 = vpop.f32.mrb[0].mxu0
      %v611 = vadd.f32 0.0, %v610
      %v612 = vpop.f32.mrb[0].mxu0
      %613 = vmatprep.mubr.f32.mxu0 0.0
      %614 = vmatmul.mubr.f32.gmra.mrb[0].mxu0 %v322
      %v615 = vpop.f32.mrb[0].mxu0
      %v616 = vadd.f32 0.0, %v615
      %v617 = vpop.f32.mrb[0].mxu0
      %618 = vmatprep.mubr.f32.mxu0 0.0
      %619 = vmatmul.mubr.f32.gmra.mrb[0].mxu0 %v325
      %v620 = vpop.f32.mrb[0].mxu0
      %v621 = vadd.f32 0.0, %v620
      %v622 = vpop.f32.mrb[0].mxu0
      %623 = vmatprep.mubr.f32.mxu0 0.0
      %624 = vmatmul.mubr.f32.gmra.mrb[0].mxu0 %v328
      %v625 = vpop.f32.mrb[0].mxu0
      %v626 = vadd.f32 0.0, %v625
      %v627 = vpop.f32.mrb[0].mxu0
      %628 = vmatprep.mubr.f32.mxu0 0.0
      %629 = vmatmul.mubr.f32.gmra.mrb[0].mxu0 %v331
      %v630 = vpop.f32.mrb[0].mxu0
      %v631 = vadd.f32 0.0, %v630
      %v632 = vpop.f32.mrb[0].mxu0
      %633 = vmatprep.mubr.f32.mxu0 0.0
      %634 = vmatmul.mubr.f32.gmra.mrb[0].mxu0 %v334
      %v635 = vpop.f32.mrb[0].mxu0
      %v636 = vadd.f32 0.0, %v635
      %v637 = vpop.f32.mrb[0].mxu0
      %638 = vmatprep.mubr.f32.mxu0 0.0
      %639 = vmatmul.mubr.f32.gmra.mrb[0].mxu0 %v337
      %v640 = vpop.f32.mrb[0].mxu0
      %v641 = vadd.f32 0.0, %v640
      %v642 = vpop.f32.mrb[0].mxu0
      %643 = vmatprep.mubr.f32.mxu0 0.0
      %644 = vmatmul.mubr.f32.gmra.mrb[0].mxu0 %v340
      %v645 = vpop.f32.mrb[0].mxu0
      %v646 = vadd.f32 0.0, %v645
      %v647 = vpop.f32.mrb[0].mxu0
      %648 = vmatprep.mubr.f32.mxu0 0.0
      %649 = vmatmul.mubr.f32.gmra.mrb[0].mxu0 %v343
      %v650 = vpop.f32.mrb[0].mxu0
      %v651 = vadd.f32 0.0, %v650
      %v652 = vpop.f32.mrb[0].mxu0
      %653 = vmatprep.mubr.f32.mxu0 0.0
      %654 = vmatmul.mubr.f32.gmra.mrb[0].mxu0 %v346
      %v655 = vpop.f32.mrb[0].mxu0
      %v656 = vadd.f32 0.0, %v655
      %v657 = vpop.f32.mrb[0].mxu0
      %658 = vmatprep.mubr.f32.mxu0 0.0
      %659 = vmatmul.mubr.f32.gmra.mrb[0].mxu0 %v349
      %v660 = vpop.f32.mrb[0].mxu0
      %v661 = vadd.f32 0.0, %v660
      %v662 = vpop.f32.mrb[0].mxu0
      %663 = vmatprep.mubr.f32.mxu0 0.0
      %664 = vmatmul.mubr.f32.gmra.mrb[0].mxu0 %v352
      %v665 = vpop.f32.mrb[0].mxu0
      %v666 = vadd.f32 0.0, %v665
      %v667 = vpop.f32.mrb[0].mxu0
      %668 = vmatprep.mubr.f32.mxu0 0.0
      %669 = vmatmul.mubr.f32.gmra.mrb[0].mxu0 %v355
      %v670 = vpop.f32.mrb[0].mxu0
      %v671 = vadd.f32 0.0, %v670
      %v672 = vpop.f32.mrb[0].mxu0
      %673 = vmatprep.mubr.f32.mxu0 0.0
      %674 = vmatmul.mubr.f32.gmra.mrb[0].mxu0 %v358
      %v675 = vpop.f32.mrb[0].mxu0
      %v676 = vadd.f32 0.0, %v675
      %v677 = vpop.f32.mrb[0].mxu0
      %678 = vmatprep.mubr.f32.mxu0 0.0
      %679 = vmatmul.mubr.f32.gmra.mrb[0].mxu0 %v361
      %v680 = vpop.f32.mrb[0].mxu0
      %v681 = vadd.f32 0.0, %v680
      %v682 = vpop.f32.mrb[0].mxu0
      %683 = vmatprep.mubr.f32.mxu0 0.0
      %684 = vmatmul.mubr.f32.gmra.mrb[0].mxu0 %v364
      %v685 = vpop.f32.mrb[0].mxu0
      %v686 = vadd.f32 0.0, %v685
      %v687 = vpop.f32.mrb[0].mxu0
      %688 = vmatprep.mubr.f32.mxu0 0.0
      %689 = vmatmul.mubr.f32.gmra.mrb[0].mxu0 %v367
      %v690 = vpop.f32.mrb[0].mxu0
      %v691 = vadd.f32 0.0, %v690
      %v692 = vpop.f32.mrb[0].mxu0
      %693 = vmatprep.mubr.f32.mxu0 0.0
      %694 = vmatmul.mubr.f32.gmra.mrb[0].mxu0 %v370
      %v695 = vpop.f32.mrb[0].mxu0
      %v696 = vadd.f32 0.0, %v695
      %v697 = vpop.f32.mrb[0].mxu0
      %698 = vmatprep.mubr.f32.mxu0 0.0
      %699 = vmatmul.mubr.f32.gmra.mrb[0].mxu0 %v373
      %v700 = vpop.f32.mrb[0].mxu0
      %v701 = vadd.f32 0.0, %v700
      %v702 = vpop.f32.mrb[0].mxu0
      %703 = vmatprep.mubr.f32.mxu0 0.0
      %704 = vmatmul.mubr.f32.gmra.mrb[0].mxu0 %v376
      %v705 = vpop.f32.mrb[0].mxu0
      %v706 = vadd.f32 0.0, %v705
      %v707 = vpop.f32.mrb[0].mxu0
      %708 = vmatprep.mubr.f32.mxu0 0.0
      %709 = vmatmul.mubr.f32.gmra.mrb[0].mxu0 %v379
      %v710 = vpop.f32.mrb[0].mxu0
      %v711 = vadd.f32 0.0, %v710
      %v712 = vpop.f32.mrb[0].mxu0
      %713 = vmatprep.mubr.f32.mxu0 0.0
      %714 = vmatmul.mubr.f32.gmra.mrb[0].mxu0 %v382
      %v715 = vpop.f32.mrb[0].mxu0
      %v716 = vadd.f32 0.0, %v715
      %v717 = vpop.f32.mrb[0].mxu0
      %718 = vmatprep.mubr.f32.mxu0 0.0
      %719 = vmatmul.mubr.f32.gmra.mrb[0].mxu0 %v385
      %v720 = vpop.f32.mrb[0].mxu0
      %v721 = vadd.f32 0.0, %v720
      %v722 = vpop.f32.mrb[0].mxu0
      %723 = vmatprep.mubr.f32.mxu0 0.0
      %724 = vmatmul.mubr.f32.gmra.mrb[0].mxu0 %v388
      %v725 = vpop.f32.mrb[0].mxu0
      %v726 = vadd.f32 0.0, %v725
      %v727 = vpop.f32.mrb[0].mxu0
      %728 = vmatprep.mubr.f32.mxu0 0.0
      %729 = vmatmul.mubr.f32.gmra.mrb[0].mxu0 %v391
      %v730 = vpop.f32.mrb[0].mxu0
      %v731 = vadd.f32 0.0, %v730
      %v732 = vpop.f32.mrb[0].mxu0
      %733 = vmatprep.mubr.f32.mxu0 0.0
      %734 = vmatmul.mubr.f32.gmra.mrb[0].mxu0 %v394
      %v735 = vpop.f32.mrb[0].mxu0
      %v736 = vadd.f32 0.0, %v735
      %v737 = vpop.f32.mrb[0].mxu0
      %738 = vmatprep.mubr.f32.mxu0 0.0
      %739 = vmatmul.mubr.f32.gmra.mrb[0].mxu0 %v397
      %v740 = vpop.f32.mrb[0].mxu0
      %v741 = vadd.f32 0.0, %v740
      %v742 = vpop.f32.mrb[0].mxu0
      %743 = vmatprep.mubr.f32.mxu0 0.0
      %744 = vmatmul.mubr.f32.gmra.mrb[0].mxu0 %v400
      %v745 = vpop.f32.mrb[0].mxu0
      %v746 = vadd.f32 0.0, %v745
      %v747 = vpop.f32.mrb[0].mxu0
      %748 = vmatprep.mubr.f32.mxu0 0.0
      %749 = vmatmul.mubr.f32.gmra.mrb[0].mxu0 %v403
      %v750 = vpop.f32.mrb[0].mxu0
      %v751 = vadd.f32 0.0, %v750
      %v752 = vpop.f32.mrb[0].mxu0
      %753 = vmatprep.mubr.f32.mxu0 0.0
      %754 = vmatmul.mubr.f32.gmra.mrb[0].mxu0 %v406
      %v755 = vpop.f32.mrb[0].mxu0
      %v756 = vadd.f32 0.0, %v755
      %v757 = vpop.f32.mrb[0].mxu0
      %758 = vmatprep.mubr.f32.mxu0 0.0
      %759 = vmatmul.mubr.f32.gmra.mrb[0].mxu0 %v409
      %v760 = vpop.f32.mrb[0].mxu0
      %v761 = vadd.f32 0.0, %v760
      %v762 = vpop.f32.mrb[0].mxu0
      %763 = vmatprep.mubr.f32.mxu0 0.0
      %764 = vmatmul.mubr.f32.gmra.mrb[0].mxu0 %v412
      %v765 = vpop.f32.mrb[0].mxu0
      %v766 = vadd.f32 0.0, %v765
      %v767 = vpop.f32.mrb[0].mxu0
      %768 = vmatprep.mubr.f32.mxu0 0.0
      %769 = vmatmul.mubr.f32.gmra.mrb[0].mxu0 %v415
      %v770 = vpop.f32.mrb[0].mxu0
      %v771 = vadd.f32 0.0, %v770
      %v772 = vpop.f32.mrb[0].mxu0
      %773 = vmatprep.mubr.f32.mxu0 0.0
      %774 = vmatmul.mubr.f32.gmra.mrb[0].mxu0 %v418
      %v775 = vpop.f32.mrb[0].mxu0
      %v776 = vadd.f32 0.0, %v775
      %v777 = vpop.f32.mrb[0].mxu0
      %778 = vmatprep.mubr.f32.mxu0 0.0
      %779 = vmatmul.mubr.f32.gmra.mrb[0].mxu0 %v421
      %v780 = vpop.f32.mrb[0].mxu0
      %v781 = vadd.f32 0.0, %v780
      %v782 = vpop.f32.mrb[0].mxu0
      %783 = vmatprep.mubr.f32.mxu0 0.0
      %784 = vmatmul.mubr.f32.gmra.mrb[0].mxu0 %v424
      %v785 = vpop.f32.mrb[0].mxu0
      %v786 = vadd.f32 0.0, %v785
      %v787 = vpop.f32.mrb[0].mxu0
      %788 = vmatprep.mubr.f32.mxu0 0.0
      %789 = vmatmul.mubr.f32.gmra.mrb[0].mxu0 %v427
      %v790 = vpop.f32.mrb[0].mxu0
      %v791 = vadd.f32 0.0, %v790
      %v792 = vpop.f32.mrb[0].mxu0
      %793 = vmatprep.mubr.f32.mxu0 0.0
      %794 = vmatmul.mubr.f32.gmra.mrb[0].mxu0 %v430
      %v795 = vpop.f32.mrb[0].mxu0
      %v796 = vadd.f32 0.0, %v795
      %v797 = vpop.f32.mrb[0].mxu0
      %798 = vmatprep.mubr.f32.mxu0 0.0
      %799 = vmatmul.mubr.f32.gmra.mrb[0].mxu0 %v433
      %v800 = vpop.f32.mrb[0].mxu0
      %v801 = vadd.f32 0.0, %v800
      %v802 = vpop.f32.mrb[0].mxu0
      %803 = vmatprep.mubr.f32.mxu0 0.0
      %804 = vmatmul.mubr.f32.gmra.mrb[0].mxu0 %v436
      %v805 = vpop.f32.mrb[0].mxu0
      %v806 = vadd.f32 0.0, %v805
      %v807 = vpop.f32.mrb[0].mxu0
      %808 = vmatprep.mubr.f32.mxu0 0.0
      %809 = vmatmul.mubr.f32.gmra.mrb[0].mxu0 %v439
      %v810 = vpop.f32.mrb[0].mxu0
      %v811 = vadd.f32 0.0, %v810
      %v812 = vpop.f32.mrb[0].mxu0
      %813 = vmatprep.mubr.f32.mxu0 0.0
      %814 = vmatmul.mubr.f32.gmra.mrb[0].mxu0 %v442
      %v815 = vpop.f32.mrb[0].mxu0
      %v816 = vadd.f32 0.0, %v815
      %v817 = vpop.f32.mrb[0].mxu0
      %818 = vmatprep.mubr.f32.mxu0 0.0
      %819 = vmatmul.mubr.f32.gmra.mrb[0].mxu0 %v445
      %v820 = vpop.f32.mrb[0].mxu0
      %v821 = vadd.f32 0.0, %v820
      %v822 = vpop.f32.mrb[0].mxu0
      %823 = vmatprep.mubr.f32.mxu0 0.0
      %824 = vmatmul.mubr.f32.gmra.mrb[0].mxu0 %v448
      %v825 = vpop.f32.mrb[0].mxu0
      %v826 = vadd.f32 0.0, %v825
      %v827 = vpop.f32.mrb[0].mxu0
      %828 = vmatprep.mubr.f32.mxu0 0.0
      %829 = vmatmul.mubr.f32.gmra.mrb[0].mxu0 %v451
      %v830 = vpop.f32.mrb[0].mxu0
      %v831 = vadd.f32 0.0, %v830
      %v832 = vpop.f32.mrb[0].mxu0
      %833 = vmatprep.mubr.f32.mxu0 0.0
      %834 = vmatmul.mubr.f32.gmra.mrb[0].mxu0 %v454
      %v835 = vpop.f32.mrb[0].mxu0
      %v836 = vadd.f32 0.0, %v835
      %v837 = vpop.f32.mrb[0].mxu0
      %838 = vmatprep.mubr.f32.mxu0 0.0
      %839 = vmatmul.mubr.f32.gmra.mrb[0].mxu0 %v457
      %v840 = vpop.f32.mrb[0].mxu0
      %v841 = vadd.f32 0.0, %v840
      %v842 = vpop.f32.mrb[0].mxu0
      %843 = vdwg.mxu0
      %v844 = vld [vmem:[%s2] sm:$0x1]
      %v846 = vlaneseq
      %v847 = vshrl.u32 %v846, 7
      %v848 = vsub.s32 0, %v847
      %v849 = vrot.slane %v844, %v848
      %v851 = vmul.f32 %v526, %v849
      %v852 = vmul.f32 %v531, %v849
      %v853 = vmul.f32 %v536, %v849
      %v854 = vmul.f32 %v541, %v849
      %v855 = vmul.f32 %v546, %v849
      %v856 = vmul.f32 %v551, %v849
      %v857 = vmul.f32 %v556, %v849
      %v858 = vmul.f32 %v561, %v849
      %v859 = vmul.f32 %v566, %v849
      %v860 = vmul.f32 %v571, %v849
      %v861 = vmul.f32 %v576, %v849
      %v862 = vmul.f32 %v581, %v849
      %v863 = vmul.f32 %v586, %v849
      %v864 = vmul.f32 %v591, %v849
      %v865 = vmul.f32 %v596, %v849
      %v866 = vmul.f32 %v601, %v849
      %v867 = vmul.f32 %v606, %v849
      %v868 = vmul.f32 %v611, %v849
      %v869 = vmul.f32 %v616, %v849
      %v870 = vmul.f32 %v621, %v849
      %v871 = vmul.f32 %v626, %v849
      %v872 = vmul.f32 %v631, %v849
      %v873 = vmul.f32 %v636, %v849
      %v874 = vmul.f32 %v641, %v849
      %v875 = vmul.f32 %v646, %v849
      %v876 = vmul.f32 %v651, %v849
      %v877 = vmul.f32 %v656, %v849
      %v878 = vmul.f32 %v661, %v849
      %v879 = vmul.f32 %v666, %v849
      %v880 = vmul.f32 %v671, %v849
      %v881 = vmul.f32 %v676, %v849
      %v882 = vmul.f32 %v681, %v849
      %v883 = vmul.f32 %v686, %v849
      %v884 = vmul.f32 %v691, %v849
      %v885 = vmul.f32 %v696, %v849
      %v886 = vmul.f32 %v701, %v849
      %v887 = vmul.f32 %v706, %v849
      %v888 = vmul.f32 %v711, %v849
      %v889 = vmul.f32 %v716, %v849
      %v890 = vmul.f32 %v721, %v849
      %v891 = vmul.f32 %v726, %v849
      %v892 = vmul.f32 %v731, %v849
      %v893 = vmul.f32 %v736, %v849
      %v894 = vmul.f32 %v741, %v849
      %v895 = vmul.f32 %v746, %v849
      %v896 = vmul.f32 %v751, %v849
      %v897 = vmul.f32 %v756, %v849
      %v898 = vmul.f32 %v761, %v849
      %v899 = vmul.f32 %v766, %v849
      %v900 = vmul.f32 %v771, %v849
      %v901 = vmul.f32 %v776, %v849
      %v902 = vmul.f32 %v781, %v849
      %v903 = vmul.f32 %v786, %v849
      %v904 = vmul.f32 %v791, %v849
      %v905 = vmul.f32 %v796, %v849
      %v906 = vmul.f32 %v801, %v849
      %v907 = vmul.f32 %v806, %v849
      %v908 = vmul.f32 %v811, %v849
      %v909 = vmul.f32 %v816, %v849
      %v910 = vmul.f32 %v821, %v849
      %v911 = vmul.f32 %v826, %v849
      %v912 = vmul.f32 %v831, %v849
      %v913 = vmul.f32 %v836, %v849
      %v914 = vmul.f32 %v841, %v849
      %v915 = vld [vmem:[%s3] sm:$0x1]
      %v917 = vlaneseq
      %v918 = vshrl.u32 %v917, 7
      %v919 = vsub.s32 0, %v918
      %v920 = vrot.slane %v915, %v919
      %v922 = vadd.f32 %v851, %v920
      %v923 = vadd.f32 %v852, %v920
      %v924 = vadd.f32 %v853, %v920
      %v925 = vadd.f32 %v854, %v920
      %v926 = vadd.f32 %v855, %v920
      %v927 = vadd.f32 %v856, %v920
      %v928 = vadd.f32 %v857, %v920
      %v929 = vadd.f32 %v858, %v920
      %v930 = vadd.f32 %v859, %v920
      %v931 = vadd.f32 %v860, %v920
      %v932 = vadd.f32 %v861, %v920
      %v933 = vadd.f32 %v862, %v920
      %v934 = vadd.f32 %v863, %v920
      %v935 = vadd.f32 %v864, %v920
      %v936 = vadd.f32 %v865, %v920
      %v937 = vadd.f32 %v866, %v920
      %v938 = vadd.f32 %v867, %v920
      %v939 = vadd.f32 %v868, %v920
      %v940 = vadd.f32 %v869, %v920
      %v941 = vadd.f32 %v870, %v920
      %v942 = vadd.f32 %v871, %v920
      %v943 = vadd.f32 %v872, %v920
      %v944 = vadd.f32 %v873, %v920
      %v945 = vadd.f32 %v874, %v920
      %v946 = vadd.f32 %v875, %v920
      %v947 = vadd.f32 %v876, %v920
      %v948 = vadd.f32 %v877, %v920
      %v949 = vadd.f32 %v878, %v920
      %v950 = vadd.f32 %v879, %v920
      %v951 = vadd.f32 %v880, %v920
      %v952 = vadd.f32 %v881, %v920
      %v953 = vadd.f32 %v882, %v920
      %v954 = vadd.f32 %v883, %v920
      %v955 = vadd.f32 %v884, %v920
      %v956 = vadd.f32 %v885, %v920
      %v957 = vadd.f32 %v886, %v920
      %v958 = vadd.f32 %v887, %v920
      %v959 = vadd.f32 %v888, %v920
      %v960 = vadd.f32 %v889, %v920
      %v961 = vadd.f32 %v890, %v920
      %v962 = vadd.f32 %v891, %v920
      %v963 = vadd.f32 %v892, %v920
      %v964 = vadd.f32 %v893, %v920
      %v965 = vadd.f32 %v894, %v920
      %v966 = vadd.f32 %v895, %v920
      %v967 = vadd.f32 %v896, %v920
      %v968 = vadd.f32 %v897, %v920
      %v969 = vadd.f32 %v898, %v920
      %v970 = vadd.f32 %v899, %v920
      %v971 = vadd.f32 %v900, %v920
      %v972 = vadd.f32 %v901, %v920
      %v973 = vadd.f32 %v902, %v920
      %v974 = vadd.f32 %v903, %v920
      %v975 = vadd.f32 %v904, %v920
      %v976 = vadd.f32 %v905, %v920
      %v977 = vadd.f32 %v906, %v920
      %v978 = vadd.f32 %v907, %v920
      %v979 = vadd.f32 %v908, %v920
      %v980 = vadd.f32 %v909, %v920
      %v981 = vadd.f32 %v910, %v920
      %v982 = vadd.f32 %v911, %v920
      %v983 = vadd.f32 %v912, %v920
      %v984 = vadd.f32 %v913, %v920
      %v985 = vadd.f32 %v914, %v920
      %v986 = vmax.f32 %v922, 0.0
      %v987 = vmax.f32 %v923, 0.0
      %v988 = vmax.f32 %v924, 0.0
      %v989 = vmax.f32 %v925, 0.0
      %v990 = vmax.f32 %v926, 0.0
      %v991 = vmax.f32 %v927, 0.0
      %v992 = vmax.f32 %v928, 0.0
      %v993 = vmax.f32 %v929, 0.0
      %v994 = vmax.f32 %v930, 0.0
      %v995 = vmax.f32 %v931, 0.0
      %v996 = vmax.f32 %v932, 0.0
      %v997 = vmax.f32 %v933, 0.0
      %v998 = vmax.f32 %v934, 0.0
      %v999 = vmax.f32 %v935, 0.0
      %v1000 = vmax.f32 %v936, 0.0
      %v1001 = vmax.f32 %v937, 0.0
      %v1002 = vmax.f32 %v938, 0.0
      %v1003 = vmax.f32 %v939, 0.0
      %v1004 = vmax.f32 %v940, 0.0
      %v1005 = vmax.f32 %v941, 0.0
      %v1006 = vmax.f32 %v942, 0.0
      %v1007 = vmax.f32 %v943, 0.0
      %v1008 = vmax.f32 %v944, 0.0
      %v1009 = vmax.f32 %v945, 0.0
      %v1010 = vmax.f32 %v946, 0.0
      %v1011 = vmax.f32 %v947, 0.0
      %v1012 = vmax.f32 %v948, 0.0
      %v1013 = vmax.f32 %v949, 0.0
      %v1014 = vmax.f32 %v950, 0.0
      %v1015 = vmax.f32 %v951, 0.0
      %v1016 = vmax.f32 %v952, 0.0
      %v1017 = vmax.f32 %v953, 0.0
      %v1018 = vmax.f32 %v954, 0.0
      %v1019 = vmax.f32 %v955, 0.0
      %v1020 = vmax.f32 %v956, 0.0
      %v1021 = vmax.f32 %v957, 0.0
      %v1022 = vmax.f32 %v958, 0.0
      %v1023 = vmax.f32 %v959, 0.0
      %v1024 = vmax.f32 %v960, 0.0
      %v1025 = vmax.f32 %v961, 0.0
      %v1026 = vmax.f32 %v962, 0.0
      %v1027 = vmax.f32 %v963, 0.0
      %v1028 = vmax.f32 %v964, 0.0
      %v1029 = vmax.f32 %v965, 0.0
      %v1030 = vmax.f32 %v966, 0.0
      %v1031 = vmax.f32 %v967, 0.0
      %v1032 = vmax.f32 %v968, 0.0
      %v1033 = vmax.f32 %v969, 0.0
      %v1034 = vmax.f32 %v970, 0.0
      %v1035 = vmax.f32 %v971, 0.0
      %v1036 = vmax.f32 %v972, 0.0
      %v1037 = vmax.f32 %v973, 0.0
      %v1038 = vmax.f32 %v974, 0.0
      %v1039 = vmax.f32 %v975, 0.0
      %v1040 = vmax.f32 %v976, 0.0
      %v1041 = vmax.f32 %v977, 0.0
      %v1042 = vmax.f32 %v978, 0.0
      %v1043 = vmax.f32 %v979, 0.0
      %v1044 = vmax.f32 %v980, 0.0
      %v1045 = vmax.f32 %v981, 0.0
      %v1046 = vmax.f32 %v982, 0.0
      %v1047 = vmax.f32 %v983, 0.0
      %v1048 = vmax.f32 %v984, 0.0
      %v1049 = vmax.f32 %v985, 0.0
      %vm1050 = vcmask 130048
      %1051 = vst.msk [vmem:[%s199] sm:$0xff] %vm1050, %v986
      %1052 = vst.msk [vmem:[%s199 + $0x8] sm:$0xff] %vm1050, %v987
      %1053 = vst.msk [vmem:[%s199 + $0x10] sm:$0xff] %vm1050, %v988
      %1054 = vst.msk [vmem:[%s199 + $0x18] sm:$0xff] %vm1050, %v989
      %1055 = vst.msk [vmem:[%s199 + $0x20] sm:$0xff] %vm1050, %v990
      %1056 = vst.msk [vmem:[%s199 + $0x28] sm:$0xff] %vm1050, %v991
      %1057 = vst.msk [vmem:[%s199 + $0x30] sm:$0xff] %vm1050, %v992
      %1058 = vst.msk [vmem:[%s199 + $0x38] sm:$0xff] %vm1050, %v993
      %1059 = vst.msk [vmem:[%s199 + $0x40] sm:$0xff] %vm1050, %v994
      %1060 = vst.msk [vmem:[%s199 + $0x48] sm:$0xff] %vm1050, %v995
      %1061 = vst.msk [vmem:[%s199 + $0x50] sm:$0xff] %vm1050, %v996
      %1062 = vst.msk [vmem:[%s199 + $0x58] sm:$0xff] %vm1050, %v997
      %1063 = vst.msk [vmem:[%s199 + $0x60] sm:$0xff] %vm1050, %v998
      %1064 = vst.msk [vmem:[%s199 + $0x68] sm:$0xff] %vm1050, %v999
      %1065 = vst.msk [vmem:[%s199 + $0x70] sm:$0xff] %vm1050, %v1000
      %1066 = vst.msk [vmem:[%s199 + $0x78] sm:$0xff] %vm1050, %v1001
      %1067 = vst.msk [vmem:[%s199 + $0x80] sm:$0xff] %vm1050, %v1002
      %1068 = vst.msk [vmem:[%s199 + $0x88] sm:$0xff] %vm1050, %v1003
      %1069 = vst.msk [vmem:[%s199 + $0x90] sm:$0xff] %vm1050, %v1004
      %1070 = vst.msk [vmem:[%s199 + $0x98] sm:$0xff] %vm1050, %v1005
      %1071 = vst.msk [vmem:[%s199 + $0xa0] sm:$0xff] %vm1050, %v1006
      %1072 = vst.msk [vmem:[%s199 + $0xa8] sm:$0xff] %vm1050, %v1007
      %1073 = vst.msk [vmem:[%s199 + $0xb0] sm:$0xff] %vm1050, %v1008
      %1074 = vst.msk [vmem:[%s199 + $0xb8] sm:$0xff] %vm1050, %v1009
      %1075 = vst.msk [vmem:[%s199 + $0xc0] sm:$0xff] %vm1050, %v1010
      %1076 = vst.msk [vmem:[%s199 + $0xc8] sm:$0xff] %vm1050, %v1011
      %1077 = vst.msk [vmem:[%s199 + $0xd0] sm:$0xff] %vm1050, %v1012
      %1078 = vst.msk [vmem:[%s199 + $0xd8] sm:$0xff] %vm1050, %v1013
      %1079 = vst.msk [vmem:[%s199 + $0xe0] sm:$0xff] %vm1050, %v1014
      %1080 = vst.msk [vmem:[%s199 + $0xe8] sm:$0xff] %vm1050, %v1015
      %1081 = vst.msk [vmem:[%s199 + $0xf0] sm:$0xff] %vm1050, %v1016
      %1082 = vst.msk [vmem:[%s199 + $0xf8] sm:$0xff] %vm1050, %v1017
      %1083 = vst.msk [vmem:[%s199 + $0x100] sm:$0xff] %vm1050, %v1018
      %1084 = vst.msk [vmem:[%s199 + $0x108] sm:$0xff] %vm1050, %v1019
      %1085 = vst.msk [vmem:[%s199 + $0x110] sm:$0xff] %vm1050, %v1020
      %1086 = vst.msk [vmem:[%s199 + $0x118] sm:$0xff] %vm1050, %v1021
      %1087 = vst.msk [vmem:[%s199 + $0x120] sm:$0xff] %vm1050, %v1022
      %1088 = vst.msk [vmem:[%s199 + $0x128] sm:$0xff] %vm1050, %v1023
      %1089 = vst.msk [vmem:[%s199 + $0x130] sm:$0xff] %vm1050, %v1024
      %1090 = vst.msk [vmem:[%s199 + $0x138] sm:$0xff] %vm1050, %v1025
      %1091 = vst.msk [vmem:[%s199 + $0x140] sm:$0xff] %vm1050, %v1026
      %1092 = vst.msk [vmem:[%s199 + $0x148] sm:$0xff] %vm1050, %v1027
      %1093 = vst.msk [vmem:[%s199 + $0x150] sm:$0xff] %vm1050, %v1028
      %1094 = vst.msk [vmem:[%s199 + $0x158] sm:$0xff] %vm1050, %v1029
      %1095 = vst.msk [vmem:[%s199 + $0x160] sm:$0xff] %vm1050, %v1030
      %1096 = vst.msk [vmem:[%s199 + $0x168] sm:$0xff] %vm1050, %v1031
      %1097 = vst.msk [vmem:[%s199 + $0x170] sm:$0xff] %vm1050, %v1032
      %1098 = vst.msk [vmem:[%s199 + $0x178] sm:$0xff] %vm1050, %v1033
      %1099 = vst.msk [vmem:[%s199 + $0x180] sm:$0xff] %vm1050, %v1034
      %1100 = vst.msk [vmem:[%s199 + $0x188] sm:$0xff] %vm1050, %v1035
      %1101 = vst.msk [vmem:[%s199 + $0x190] sm:$0xff] %vm1050, %v1036
      %1102 = vst.msk [vmem:[%s199 + $0x198] sm:$0xff] %vm1050, %v1037
      %1103 = vst.msk [vmem:[%s199 + $0x1a0] sm:$0xff] %vm1050, %v1038
      %1104 = vst.msk [vmem:[%s199 + $0x1a8] sm:$0xff] %vm1050, %v1039
      %1105 = vst.msk [vmem:[%s199 + $0x1b0] sm:$0xff] %vm1050, %v1040
      %1106 = vst.msk [vmem:[%s199 + $0x1b8] sm:$0xff] %vm1050, %v1041
      %1107 = vst.msk [vmem:[%s199 + $0x1c0] sm:$0xff] %vm1050, %v1042
      %1108 = vst.msk [vmem:[%s199 + $0x1c8] sm:$0xff] %vm1050, %v1043
      %1109 = vst.msk [vmem:[%s199 + $0x1d0] sm:$0xff] %vm1050, %v1044
      %1110 = vst.msk [vmem:[%s199 + $0x1d8] sm:$0xff] %vm1050, %v1045
      %1111 = vst.msk [vmem:[%s199 + $0x1e0] sm:$0xff] %vm1050, %v1046
      %1112 = vst.msk [vmem:[%s199 + $0x1e8] sm:$0xff] %vm1050, %v1047
      %1113 = vst.msk [vmem:[%s199 + $0x1f0] sm:$0xff] %vm1050, %v1048
      %1114 = vst.msk [vmem:[%s199 + $0x1f8] sm:$0xff] %vm1050, %v1049
      %s1115 = smul.u32 64, %s15
      %p1116 = scmp.lt.s32.totalorder %s1115, 255
      %s1117 = scalar_select %p1116, %s1115, 255
      %s1118 = smul.addr %s1117, 8
      %s1119 = scalar_lea.vmem %s4, %s1118
      // Predicated region
      $region37: #{tpu_custom_call.1} parent=35 // pred_check
        %p1120 = pneg %p122
      $region38: #{tpu_custom_call.1} parent=35 // pred_check_branch
        %1122 = sbr.rel (%p1120) target = $region40
      $region39: #{tpu_custom_call.1} parent=35 // pred_region
        %s1123 = smul.u32 64, %s15
      $region40: #{tpu_custom_call.1} parent=35 // pred_fallthru
        _
    $region36: #{tpu_custom_call.1} parent=5 // pred_fallthru
      _
    %p1124 = scmp.le.s32.totalorder 2, %s10
    // Predicated region
    $region41: #{tpu_custom_call.1} parent=5 // pred_check
      %p1125 = pneg %p1124
    $region42: #{tpu_custom_call.1} parent=5 // pred_check_branch
      %1127 = sbr.rel (%p1125) target = $region44
    $region43: #{tpu_custom_call.1} parent=5 // pred_region
      %s1128 = ssub.s32 %s10, 2
      // Predicated region
      $region45: #{tpu_custom_call.1} parent=43 // pred_check
        %p1129 = pneg %p128
      $region46: #{tpu_custom_call.1} parent=43 // pred_check_branch
        %1131 = sbr.rel (%p1129) target = $region48
      $region47: #{tpu_custom_call.1} parent=43 // pred_region
        %s1132 = smul.u32 64, %s16
        %p1133 = scmp.lt.s32.totalorder %s1132, 255
        %s1134 = scalar_select %p1133, %s1132, 255
        %s1135 = smul.addr %s1134, 8
        %s1136 = scalar_lea.vmem %s4, %s1135
      $region48: #{tpu_custom_call.1} parent=43 // pred_fallthru
        _
    $region44: #{tpu_custom_call.1} parent=5 // pred_fallthru
      _
  $region6: #{tpu_custom_call.1} parent=0 // loop_footer
    %s14 = sadd.s32 1, %s10
  $region7: #{tpu_custom_call.1} parent=0 // loop_footer_branch
    %9 = sbr.rel target = $region3
  $region8: #{tpu_custom_call.1} parent=0 // loop_exit
    _

</llo_original>
